<compile_context>
chip_gen: v7x
topology: tpu7x:2x2x1
jax: 0.10.0
libtpu: 0.0.40
codegen_flags: <defaults>
</compile_context>

<pallas_src>
import functools

import jax
import jax.numpy as jnp
from jax.experimental import pallas as pl
from jax.experimental.pallas import tpu as pltpu


def _conv_lrelu_kernel(x_ref, w_ref, b_ref, o_ref, *, kh, tile_h, slope):
    """One grid step = one (batch, H-tile) output block.

    x_ref : (1, Hp, Wp*Cin)            lane-packed padded image (resident across H tiles)
    w_ref : (KH, Wp*Cin, W_out*Cout)   block-Toeplitz, spectrally-normalized weights
    b_ref : (1, W_out*Cout)            bias tiled along W_out (f32)
    o_ref : (1, TILE_H, W_out*Cout)    lane-packed output tile
    """
    r0 = pl.multiple_of(pl.program_id(1) * tile_h, tile_h)

    acc = None
    for i in range(kh):
        # Lane-aligned, full-width row slab; only the sublane offset i is unaligned.
        slab = x_ref[0, pl.ds(r0 + i, tile_h), :]                    # (TILE_H, Wp*Cin)
        part = jnp.dot(slab, w_ref[i], preferred_element_type=jnp.float32)
        acc = part if acc is None else acc + part                    # (TILE_H, W_out*Cout) f32

    acc = acc + b_ref[...]                                           # broadcast over sublanes
    y = jnp.maximum(acc, slope * acc)                                # LeakyReLU, 0 <= slope <= 1
    o_ref[0] = y.astype(o_ref.dtype)                                 # dense, unmasked lane store


def spectral_normalize(weight_oihw, u):
    """One power-iteration step, same math as torch.nn.utils.spectral_norm."""
    cout = weight_oihw.shape[0]
    w_mat = weight_oihw.reshape(cout, -1)
    v = w_mat.T @ u
    v = v / jnp.maximum(jnp.linalg.norm(v), 1e-12)
    u_new = w_mat @ v
    u_new = u_new / jnp.maximum(jnp.linalg.norm(u_new), 1e-12)
    sigma = u_new @ (w_mat @ v)
    # TODO(synk): torch buffers the updated u between calls; a single forward does not need it.
    return weight_oihw / sigma


def _pick_tile_h(h_out, cap=64):
    """Largest multiple-of-8 H tile (<= cap) that divides the 8-row-padded output height."""
    h_pad = -(-h_out // 8) * 8
    tile_h = 8
    for cand in range(min(cap, h_pad), 7, -8):
        if h_pad % cand == 0:
            tile_h = cand
            break
    return tile_h, h_pad


def _toeplitz_weights(w_hwio, wp, w_out, dtype):
    """Fold (KW, Cin) and the output column into one matmul weight.

    wt[i, wcol*Cin + c, col*Cout + co] = w_hwio[i, wcol-col, c, co] if 0 <= wcol-col < KW else 0
    """
    kh, kw, cin, cout = w_hwio.shape
    cols = jnp.arange(w_out)
    wcols = jnp.arange(wp)
    wt = jnp.zeros((kh, wp, cin, w_out, cout), jnp.float32)
    for j in range(kw):
        sel = (wcols[:, None] == cols[None, :] + j).astype(jnp.float32)          # (Wp, W_out)
        wt = wt + sel[None, :, None, :, None] * \
            w_hwio[:, j].astype(jnp.float32)[:, None, :, None, :]
    return wt.reshape(kh, wp * cin, w_out * cout).astype(dtype)


def sn_conv_with_activation(x_nchw, weight_oihw, bias, u, *, padding=1, stride=1, slope=0.2):
    # TODO(synk): only stride=1 / dilation=1 / groups=1 (the module defaults) are implemented.
    assert stride == 1

    w_sn = spectral_normalize(weight_oihw, u)
    w_hwio = jnp.transpose(w_sn, (2, 3, 1, 0))                       # (KH, KW, Cin, Cout)

    n, cin, h, wd = x_nchw.shape
    kh, kw, _, cout = w_hwio.shape
    h_out = h + 2 * padding - kh + 1
    w_out = wd + 2 * padding - kw + 1
    wp = wd + 2 * padding

    tile_h, h_pad = _pick_tile_h(h_out)
    n_h_tiles = h_pad // tile_h
    hp = h_pad + kh - 1                                              # padded rows the kernel reads

    # Lane-packed NHWC: (N, Hp, Wp*Cin).  The final reshape is free (merges the minor dims);
    # the transpose+pad is one HBM pass.
    # TODO(synk): fold the zero padding / layout change into the kernel to drop that pass.
    x_nhwc = jnp.transpose(x_nchw, (0, 2, 3, 1))
    x_padded = jnp.pad(
        x_nhwc,
        ((0, 0), (padding, padding + (h_pad - h_out)), (padding, padding), (0, 0)))
    x_packed = x_padded.reshape(n, hp, wp * cin)

    # Block-Toeplitz weights & W_out-tiled bias (tiny wrapper-side parameter glue).
    # TODO(synk): for wide channels (Cin >= 128) a folded-K im2col path is preferable; the
    # Toeplitz weight grows with (Wp*Cin)*(W_out*Cout) and targets shallow layers like this one.
    wt = _toeplitz_weights(w_hwio, wp, w_out, x_nchw.dtype)
    b_row = jnp.tile(bias.astype(jnp.float32), w_out).reshape(1, w_out * cout)

    kernel = functools.partial(_conv_lrelu_kernel, kh=kh, tile_h=tile_h, slope=slope)

    isz = jnp.dtype(x_nchw.dtype).itemsize
    in_blk = hp * wp * cin * isz
    w_blk = wt.size * jnp.dtype(wt.dtype).itemsize
    b_blk = b_row.size * 4
    out_blk = tile_h * w_out * cout * isz
    vmem_limit = int(min(max(2 * (in_blk + w_blk + b_blk + out_blk) + (4 << 20), 8 << 20),
                         48 << 20))

    cost = pl.CostEstimate(
        flops=2 * n * n_h_tiles * kh * tile_h * (wp * cin) * (w_out * cout),
        transcendentals=0,
        bytes_accessed=int(n * in_blk + w_blk + b_blk + n * h_pad * w_out * cout * isz),
    )

    out_packed = pl.pallas_call(
        kernel,
        out_shape=jax.ShapeDtypeStruct((n, h_pad, w_out * cout), x_nchw.dtype),
        grid=(n, n_h_tiles),
        in_specs=[
            # Full padded image per batch element; resident across the H-tile axis.
            # TODO(synk): for large images switch to overlapping halo windows along H (manual
            # DMA) so the block fits v7x's 64 MiB VMEM and pipelines per tile.
            pl.BlockSpec((1, hp, wp * cin), lambda b, t: (b, 0, 0)),
            pl.BlockSpec((kh, wp * cin, w_out * cout), lambda b, t: (0, 0, 0)),
            pl.BlockSpec((1, w_out * cout), lambda b, t: (0, 0)),
        ],
        out_specs=pl.BlockSpec((1, tile_h, w_out * cout), lambda b, t: (b, t, 0)),
        compiler_params=pltpu.CompilerParams(
            # batch is the megacore axis; the H-tile axis reuses the resident image block.
            dimension_semantics=("parallel", "arbitrary"),
            vmem_limit_bytes=vmem_limit,
        ),
        cost_estimate=cost,
    )(x_packed, wt, b_row)

    out = out_packed.reshape(n, h_pad, w_out, cout)[:, :h_out]       # free reshape (+slice)
    # TODO(synk): emitting NCHW straight from the kernel would need a (Cout, M) store, which
    # with the column-packed result is a lane-splitting permute; keep one XLA transpose instead.
    return jnp.transpose(out, (0, 3, 1, 2))


def _reference(x_nchw, weight_oihw, bias, u, padding=1, slope=0.2):
    w_sn = spectral_normalize(weight_oihw, u)
    y = jax.lax.conv_general_dilated(
        x_nchw, w_sn, window_strides=(1, 1),
        padding=((padding, padding), (padding, padding)),
        dimension_numbers=("NCHW", "OIHW", "NCHW"))
    y = y + bias[None, :, None, None]
    return jnp.where(y > 0, y, slope * y)


if __name__ == "__main__":
    key = jax.random.PRNGKey(0)
    k_x, k_w, k_b, k_u = jax.random.split(key, 4)

    N, Cin, H, W = 2, 4, 16, 16
    Cout, K = 8, 3
    fan_in = Cin * K * K

    x = jax.random.normal(k_x, (N, Cin, H, W), jnp.float32)
    # kaiming_normal_ (fan_in mode, leaky_relu gain sqrt(2))
    weight = jax.random.normal(k_w, (Cout, Cin, K, K), jnp.float32) * jnp.sqrt(2.0 / fan_in)
    # Conv2d default bias init: U(-1/sqrt(fan_in), 1/sqrt(fan_in))
    bound = 1.0 / jnp.sqrt(fan_in)
    bias = jax.random.uniform(k_b, (Cout,), jnp.float32, -bound, bound)
    # spectral-norm power-iteration vector u (deterministic)
    u = jax.random.normal(k_u, (Cout,), jnp.float32)
    u = u / jnp.linalg.norm(u)

    out = sn_conv_with_activation(x, weight, bias, u)
    out = jax.block_until_ready(out)

    ref = _reference(x, weight, bias, u)
    assert out.shape == (N, Cout, H, W)
    assert jnp.allclose(out, ref, atol=1e-4, rtol=1e-4)

    print("KERNEL_OK")
</pallas_src>

<mosaic_0001>
module attributes {stable_mosaic.version = 11 : i64} {
  func.func @_conv_lrelu_kernel(%arg0: i32, %arg1: i32, %arg2: memref<1x18x72xf32, #tpu.memory_space<vmem>>, %arg3: memref<3x72x128xf32, #tpu.memory_space<vmem>>, %arg4: memref<1x128xf32, #tpu.memory_space<vmem>>, %arg5: memref<1x16x128xf32, #tpu.memory_space<vmem>>) attributes {dimension_semantics = [#tpu.dimension_semantics<parallel>, #tpu.dimension_semantics<arbitrary>], iteration_bounds = array<i64: 2, 1>, scalar_prefetch = 0 : i64, scratch_operands = 0 : i64, tpu.core_type = #tpu.core_type<tc>, window_params = [{transform_indices = @transform_0, window_bounds = array<i64: 1, 18, 72>}, {pipeline_mode = #tpu.pipeline_mode<synchronous>, transform_indices = @transform_1, window_bounds = array<i64: 3, 72, 128>}, {pipeline_mode = #tpu.pipeline_mode<synchronous>, transform_indices = @transform_2, window_bounds = array<i64: 1, 128>}, {transform_indices = @transform_3, window_bounds = array<i64: 1, 16, 128>}]} {
    %c16_i32 = arith.constant 16 : i32
    %0 = arith.muli %arg1, %c16_i32 : i32
    %1 = tpu.assume_multiple %0, 16 : i32
    %c0_i32 = arith.constant 0 : i32
    %2 = arith.addi %1, %c0_i32 : i32
    %c0 = arith.constant 0 : index
    %3 = arith.index_cast %2 : i32 to index
    %c0_0 = arith.constant 0 : index
    %4 = vector.load %arg2[%c0, %3, %c0_0] : memref<1x18x72xf32, #tpu.memory_space<vmem>>, vector<1x16x72xf32>
    %5 = vector.shape_cast %4 : vector<1x16x72xf32> to vector<16x72xf32>
    %c0_1 = arith.constant 0 : index
    %c0_2 = arith.constant 0 : index
    %c0_3 = arith.constant 0 : index
    %6 = vector.load %arg3[%c0_1, %c0_2, %c0_3] : memref<3x72x128xf32, #tpu.memory_space<vmem>>, vector<1x72x128xf32>
    %7 = vector.shape_cast %6 : vector<1x72x128xf32> to vector<72x128xf32>
    %cst = arith.constant dense<0.000000e+00> : vector<16x128xf32>
    %8 = tpu.matmul %5, %7, %cst {dimension_numbers = #tpu.dot_dimension_numbers<[1], [0], [0], [1], [0, 0, 1, 1], [], []>} : vector<16x72xf32>, vector<72x128xf32>, vector<16x128xf32> -> vector<16x128xf32>
    %c1_i32 = arith.constant 1 : i32
    %9 = arith.addi %1, %c1_i32 : i32
    %c0_4 = arith.constant 0 : index
    %10 = arith.index_cast %9 : i32 to index
    %c0_5 = arith.constant 0 : index
    %11 = vector.load %arg2[%c0_4, %10, %c0_5] : memref<1x18x72xf32, #tpu.memory_space<vmem>>, vector<1x16x72xf32>
    %12 = vector.shape_cast %11 : vector<1x16x72xf32> to vector<16x72xf32>
    %c1 = arith.constant 1 : index
    %c0_6 = arith.constant 0 : index
    %c0_7 = arith.constant 0 : index
    %13 = vector.load %arg3[%c1, %c0_6, %c0_7] : memref<3x72x128xf32, #tpu.memory_space<vmem>>, vector<1x72x128xf32>
    %14 = vector.shape_cast %13 : vector<1x72x128xf32> to vector<72x128xf32>
    %cst_8 = arith.constant dense<0.000000e+00> : vector<16x128xf32>
    %15 = tpu.matmul %12, %14, %cst_8 {dimension_numbers = #tpu.dot_dimension_numbers<[1], [0], [0], [1], [0, 0, 1, 1], [], []>} : vector<16x72xf32>, vector<72x128xf32>, vector<16x128xf32> -> vector<16x128xf32>
    %16 = arith.addf %8, %15 : vector<16x128xf32>
    %c2_i32 = arith.constant 2 : i32
    %17 = arith.addi %1, %c2_i32 : i32
    %c0_9 = arith.constant 0 : index
    %18 = arith.index_cast %17 : i32 to index
    %c0_10 = arith.constant 0 : index
    %19 = vector.load %arg2[%c0_9, %18, %c0_10] : memref<1x18x72xf32, #tpu.memory_space<vmem>>, vector<1x16x72xf32>
    %20 = vector.shape_cast %19 : vector<1x16x72xf32> to vector<16x72xf32>
    %c2 = arith.constant 2 : index
    %c0_11 = arith.constant 0 : index
    %c0_12 = arith.constant 0 : index
    %21 = vector.load %arg3[%c2, %c0_11, %c0_12] : memref<3x72x128xf32, #tpu.memory_space<vmem>>, vector<1x72x128xf32>
    %22 = vector.shape_cast %21 : vector<1x72x128xf32> to vector<72x128xf32>
    %cst_13 = arith.constant dense<0.000000e+00> : vector<16x128xf32>
    %23 = tpu.matmul %20, %22, %cst_13 {dimension_numbers = #tpu.dot_dimension_numbers<[1], [0], [0], [1], [0, 0, 1, 1], [], []>} : vector<16x72xf32>, vector<72x128xf32>, vector<16x128xf32> -> vector<16x128xf32>
    %24 = arith.addf %16, %23 : vector<16x128xf32>
    %c0_14 = arith.constant 0 : index
    %c0_15 = arith.constant 0 : index
    %25 = vector.load %arg4[%c0_14, %c0_15] : memref<1x128xf32, #tpu.memory_space<vmem>>, vector<1x128xf32>
    %26 = vector.broadcast %25 : vector<1x128xf32> to vector<16x128xf32>
    %27 = arith.addf %24, %26 : vector<16x128xf32>
    %cst_16 = arith.constant 2.000000e-01 : f32
    %28 = vector.broadcast %cst_16 : f32 to vector<16x128xf32>
    %29 = arith.mulf %28, %27 : vector<16x128xf32>
    %30 = arith.maximumf %27, %29 : vector<16x128xf32>
    %c0_17 = arith.constant 0 : index
    %c0_18 = arith.constant 0 : index
    %c0_19 = arith.constant 0 : index
    %31 = vector.load %arg5[%c0_17, %c0_18, %c0_19] : memref<1x16x128xf32, #tpu.memory_space<vmem>>, vector<1x16x128xf32>
    %32 = vector.shape_cast %31 : vector<1x16x128xf32> to vector<16x128xf32>
    %33 = vector.shape_cast %30 : vector<16x128xf32> to vector<1x16x128xf32>
    tpu.vector_store %arg5[%c0_17, %c0_18, %c0_19], %33 {strides = array<i32>} : memref<1x16x128xf32, #tpu.memory_space<vmem>>, vector<1x16x128xf32>,
    return
  }
  func.func @transform_0(%arg0: i32, %arg1: i32) -> (i32, i32, i32) {
    %c0_i32 = arith.constant 0 : i32
    %c0_i32_0 = arith.constant 0 : i32
    %c0_i32_1 = arith.constant 0 : i32
    return %arg0, %c0_i32, %c0_i32_0 : i32, i32, i32
  }
  func.func @transform_1(%arg0: i32, %arg1: i32) -> (i32, i32, i32) {
    %c0_i32 = arith.constant 0 : i32
    %c0_i32_0 = arith.constant 0 : i32
    %c0_i32_1 = arith.constant 0 : i32
    %c0_i32_2 = arith.constant 0 : i32
    return %c0_i32, %c0_i32_0, %c0_i32_1 : i32, i32, i32
  }
  func.func @transform_2(%arg0: i32, %arg1: i32) -> (i32, i32) {
    %c0_i32 = arith.constant 0 : i32
    %c0_i32_0 = arith.constant 0 : i32
    %c0_i32_1 = arith.constant 0 : i32
    return %c0_i32, %c0_i32_0 : i32, i32
  }
  func.func @transform_3(%arg0: i32, %arg1: i32) -> (i32, i32, i32) {
    %c0_i32 = arith.constant 0 : i32
    %c0_i32_0 = arith.constant 0 : i32
    return %arg0, %arg1, %c0_i32 : i32, i32, i32
  }
}

</mosaic_0001>

<llo_original>
// kernel: tpu_custom_call.1
$region0: #{tpu_custom_call.1}
  #allocation0 [shape = 'u32[]', space=smem, size = 0x4, offset = 0x4, fixed_abs, tag = 'smem constant byte address 0x4 - core index']
  #allocation1 [shape = 'u32[144,128]{1,0:T(1,128)}', space=vmem, size = 0x12000, scoped, tag = 'internal scratch']
  %s0 = inlined_call_operand.vmem [shape: f32[2,18,72], index: 0, kind: input, shape index: {}]
  %s1 = inlined_call_operand.hbm [shape: f32[3,72,128], index: 1, kind: input, shape index: {}]
  %s2 = inlined_call_operand.vmem [shape: f32[1,128], index: 2, kind: input, shape index: {}]
  %s3 = inlined_call_operand.hbm [shape: f32[2,16,128], index: 3, kind: output, shape index: {}]
  %s4 = sld [smem:[#allocation0]]
  $region49: #{tpu_custom_call.1} parent=0
    _
  %s6 = ssub.s32 1, %s4
  %s7 = scalar_select 0, %s6, %s4
  $region1: #{tpu_custom_call.1} parent=0
    #allocation2 [shape = 'u8[110592]{0}', space=vmem, size = 0x1b000, scoped, tag = 'input window, operand 1, single buffered']
    #allocation3 [shape = 's32[2]{0}', space=sflag, size = 0x8, scoped, tag = 'scoped memory for tpu_custom_call.1']
    #allocation4 [shape = 's32[2]{0}', space=sflag, size = 0x8, scoped, tag = 'scoped memory for tpu_custom_call.1']
    #allocation5 [shape = 'u8[16384]{0}', space=vmem, size = 0x4000, scoped, tag = 'output window, operand 0']
    %8 = vsyncpa [#allocation3], 0
    %9 = vsyncpa [#allocation4], 0
    %s10 = scalar_lea.sflag [#allocation4], 1
    %11 = vsyncpa %s10, 0
    loop: start=0, step=1, limit=4
    $region2: #{tpu_custom_call.1} parent=1 // loop_pre_header
      _
    $region3: #{tpu_custom_call.1} parent=1 // loop_header
      %s13 = sphi 0, %s17
      %p14 = scmp.ge.s32.totalorder %s13, 4
      %s20 = sphi 0, %s32
      %s21 = sphi 0, %s28
      %s22 = sphi 0, %s20
      %s23 = sphi 0, %s21
      %s24 = sphi 0, %s22
      %s25 = sphi 0, %s23
      %s35 = sphi 0, %s37
      %s38 = sphi 0, %s35
      %s39 = sphi 0, %s38
      %s55 = sphi 0, %s39
      %s59 = sphi 0, %s59
      %s61 = sphi 0, %s59
      %s62 = sphi 0, %s61
      %s76 = sphi 0, %s62
      %s80 = sphi 0, %s80
      %s82 = sphi 0, %s80
      %s83 = sphi 0, %s82
      %s97 = sphi 0, %s83
      %s105 = sphi 0, %s107
      %s108 = sphi 0, %s105
      %s109 = sphi 0, %s108
      %s125 = sphi 0, %s109
    $region4: #{tpu_custom_call.1} parent=1 // loop_header_branch
      %16 = sbr.rel (%p14) target = $region8
    $region5: #{tpu_custom_call.1} parent=1 // loop_body
      %s18 = ssub.s32 %s13, 1
      %s19 = ssub.s32 %s13, 2
      %s26 = sadd.s32 1, %s21
      %p27 = scmp.ge.s32.totalorder %s26, 1
      %s28 = scalar_select %p27, 0, %s26
      %s29 = sadd.s32 1, %s20
      %s30 = scalar_select %p27, %s29, %s20
      %p31 = scmp.ge.s32.totalorder %s30, 2
      %s32 = scalar_select %p31, 0, %s30
      %s33 = ssub.s32 %s20, %s32
      %p34 = scmp.eq.s32.totalorder %s33, 0
      %s36 = sadd.s32 %s35, 1
      %s37 = scalar_select %p34, %s35, %s36
      %p40 = pneg %p34
      %p41 = scmp.eq.s32.totalorder %s13, 1
      %p42 = por %p40, %p41
      %p43 = scmp.ne.s32.totalorder %s35, %s38
      %p44 = scmp.eq.s32.totalorder %s13, 0
      %p45 = por %p43, %p44
      %p46 = scmp.ne.s32.totalorder %s35, %s38
      %p47 = scmp.eq.s32.totalorder %s18, 1
      %p48 = por %p46, %p47
      %p49 = scmp.ne.s32.totalorder %s38, %s39
      %p50 = scmp.eq.s32.totalorder %s18, 0
      %p51 = por %p49, %p50
      %p52 = scmp.ne.s32.totalorder %s38, %s39
      %p53 = scmp.eq.s32.totalorder %s19, 1
      %p54 = por %p52, %p53
      %p56 = scmp.ne.s32.totalorder %s39, %s55
      %p57 = scmp.eq.s32.totalorder %s19, 0
      %p58 = por %p56, %p57
      %s60 = sadd.s32 %s59, 1
      %p63 = scmp.eq.s32.totalorder %s13, 1
      %p64 = scmp.ne.s32.totalorder %s59, %s61
      %p65 = scmp.eq.s32.totalorder %s13, 0
      %p66 = por %p64, %p65
      %p67 = scmp.ne.s32.totalorder %s59, %s61
      %p68 = scmp.eq.s32.totalorder %s18, 1
      %p69 = por %p67, %p68
      %p70 = scmp.ne.s32.totalorder %s61, %s62
      %p71 = scmp.eq.s32.totalorder %s18, 0
      %p72 = por %p70, %p71
      %p73 = scmp.ne.s32.totalorder %s61, %s62
      %p74 = scmp.eq.s32.totalorder %s19, 1
      %p75 = por %p73, %p74
      %p77 = scmp.ne.s32.totalorder %s62, %s76
      %p78 = scmp.eq.s32.totalorder %s19, 0
      %p79 = por %p77, %p78
      %s81 = sadd.s32 %s80, 1
      %p84 = scmp.eq.s32.totalorder %s13, 1
      %p85 = scmp.ne.s32.totalorder %s80, %s82
      %p86 = scmp.eq.s32.totalorder %s13, 0
      %p87 = por %p85, %p86
      %p88 = scmp.ne.s32.totalorder %s80, %s82
      %p89 = scmp.eq.s32.totalorder %s18, 1
      %p90 = por %p88, %p89
      %p91 = scmp.ne.s32.totalorder %s82, %s83
      %p92 = scmp.eq.s32.totalorder %s18, 0
      %p93 = por %p91, %p92
      %p94 = scmp.ne.s32.totalorder %s82, %s83
      %p95 = scmp.eq.s32.totalorder %s19, 1
      %p96 = por %p94, %p95
      %p98 = scmp.ne.s32.totalorder %s83, %s97
      %p99 = scmp.eq.s32.totalorder %s19, 0
      %p100 = por %p98, %p99
      %s101 = ssub.s32 %s20, %s32
      %s102 = ssub.s32 %s21, %s28
      %s103 = sor.u32 %s101, %s102
      %p104 = scmp.eq.s32.totalorder %s103, 0
      %s106 = sadd.s32 %s105, 1
      %s107 = scalar_select %p104, %s105, %s106
      %p110 = pneg %p104
      %p111 = scmp.eq.s32.totalorder %s13, 1
      %p112 = por %p110, %p111
      %p113 = scmp.ne.s32.totalorder %s105, %s108
      %p114 = scmp.eq.s32.totalorder %s13, 0
      %p115 = por %p113, %p114
      %p116 = scmp.ne.s32.totalorder %s105, %s108
      %p117 = scmp.eq.s32.totalorder %s18, 1
      %p118 = por %p116, %p117
      %p119 = scmp.ne.s32.totalorder %s108, %s109
      %p120 = scmp.eq.s32.totalorder %s18, 0
      %p121 = por %p119, %p120
      %p122 = scmp.ne.s32.totalorder %s108, %s109
      %p123 = scmp.eq.s32.totalorder %s19, 1
      %p124 = por %p122, %p123
      %p126 = scmp.ne.s32.totalorder %s109, %s125
      %p127 = scmp.eq.s32.totalorder %s19, 0
      %p128 = por %p126, %p127
      %p129 = scmp.le.s32.totalorder 1, %s13
      %p130 = scmp.lt.s32.totalorder %s13, 3
      %p131 = pnand %p129, %p130
      %p132 = pneg %p131
      // Predicated region
      $region9: #{tpu_custom_call.1} parent=5 // pred_check
        _
      $region10: #{tpu_custom_call.1} parent=5 // pred_check_branch
        %134 = sbr.rel (%p131) target = $region12
      $region11: #{tpu_custom_call.1} parent=5 // pred_region
        %s135 = ssub.s32 %s13, 1
        // Predicated region
        $region13: #{tpu_custom_call.1} parent=11 // pred_check
          %p136 = pneg %p72
        $region14: #{tpu_custom_call.1} parent=11 // pred_check_branch
          %138 = sbr.rel (%p136) target = $region16
        $region15: #{tpu_custom_call.1} parent=11 // pred_region
          %s140 = ssub.s32 3456, 3456
          %141 = vsyncadd [#allocation3], %s140
          %s142 = sshll.u32 [#allocation2], 4
          %s143 = int_to_ptr.vmem [resolvable:$true] %s142
          %148 = dma.hbm_to_vmem [thread:$0]  %s1, 3456, %s143, [#allocation3], 128, 128, 8
        $region16: #{tpu_custom_call.1} parent=11 // pred_fallthru
          _
        // Predicated region
        $region17: #{tpu_custom_call.1} parent=11 // pred_check
          %p149 = pneg %p93
        $region18: #{tpu_custom_call.1} parent=11 // pred_check_branch
          %151 = sbr.rel (%p149) target = $region20
        $region19: #{tpu_custom_call.1} parent=11 // pred_region
          _
        $region20: #{tpu_custom_call.1} parent=11 // pred_fallthru
          _
      $region12: #{tpu_custom_call.1} parent=5 // pred_fallthru
        _
      %p152 = scmp.lt.s32.totalorder %s13, 2
      // Predicated region
      $region21: #{tpu_custom_call.1} parent=5 // pred_check
        %p153 = pneg %p152
      $region22: #{tpu_custom_call.1} parent=5 // pred_check_branch
        %155 = sbr.rel (%p153) target = $region24
      $region23: #{tpu_custom_call.1} parent=5 // pred_region
        // Predicated region
        $region25: #{tpu_custom_call.1} parent=23 // pred_check
          %p156 = pneg %p45
        $region26: #{tpu_custom_call.1} parent=23 // pred_check_branch
          %158 = sbr.rel (%p156) target = $region28
        $region27: #{tpu_custom_call.1} parent=23 // pred_region
          %p159 = scmp.lt.s32.totalorder %s20, 1
          %s160 = scalar_select %p159, %s20, 1
          %s161 = smul.addr %s160, 3
          %s162 = smul.addr %s161, 8
          %s163 = scalar_lea.vmem %s0, %s162
        $region28: #{tpu_custom_call.1} parent=23 // pred_fallthru
          _
      $region24: #{tpu_custom_call.1} parent=5 // pred_fallthru
        _
      %p164 = scmp.le.s32.totalorder 1, %s13
      %p165 = scmp.lt.s32.totalorder %s13, 3
      %p166 = pnand %p164, %p165
      %p167 = pneg %p166
      // Predicated region
      $region29: #{tpu_custom_call.1} parent=5 // pred_check
        _
      $region30: #{tpu_custom_call.1} parent=5 // pred_check_branch
        %169 = sbr.rel (%p166) target = $region32
      $region31: #{tpu_custom_call.1} parent=5 // pred_region
        %s170 = ssub.s32 %s13, 1
        // Predicated region
        $region33: #{tpu_custom_call.1} parent=31 // pred_check
          %p171 = pneg %p72
        $region34: #{tpu_custom_call.1} parent=31 // pred_check_branch
          %173 = sbr.rel (%p171) target = $region36
        $region35: #{tpu_custom_call.1} parent=31 // pred_region
          %174 = dma.done [#allocation3], 3456
        $region36: #{tpu_custom_call.1} parent=31 // pred_fallthru
          _
        %p175 = scmp.lt.s32.totalorder %s22, 1
        %s176 = scalar_select %p175, %s22, 1
        %s177 = smul.addr %s176, 3
        %s178 = smul.addr %s177, 8
        %s179 = scalar_lea.vmem %s0, %s178
        %p180 = pneg %p51
        %p181 = pneg %p48
        %p182 = pneg %p72
        %p183 = pneg %p69
        %p184 = pneg %p93
        %p185 = pneg %p90
        %p186 = pneg %p121
        %p187 = pneg %p118
        %s188 = sand.u32 %s108, 1
        %s189 = scalar_lea.sflag [#allocation4], %s188
        %s190 = sand.u32 %s108, 1
        %s191 = smul.addr %s190, 16
        %s192 = scalar_lea.vmem [#allocation5], %s191
        %p193 = scmp.lt.s32.totalorder %s22, 1
        %s194 = scalar_select %p193, %s22, 1
        %s195 = smul.addr %s194, 3
        %s196 = smul.addr %s195, 8
        %s197 = scalar_lea.vmem %s0, %s196
        %s198 = smul.u32 2, %s23
        %s199 = smul.u32 %s23, 16
        %s200 = scalar_lea.vmem %s197, %s199
        %v201 = vld [vmem:[%s200] sm:$0xff]
        %v202 = vld [vmem:[%s200 + $0x8] sm:$0xff]
        %v203 = vld [vmem:[#allocation2] sm:$0xff]
        %v204 = vld [vmem:[#allocation2 + $0x8] sm:$0xff]
        %v205 = vld [vmem:[#allocation2 + $0x10] sm:$0xff]
        %v206 = vld [vmem:[#allocation2 + $0x18] sm:$0xff]
        %v207 = vld [vmem:[#allocation2 + $0x20] sm:$0xff]
        %v208 = vld [vmem:[#allocation2 + $0x28] sm:$0xff]
        %v209 = vld [vmem:[#allocation2 + $0x30] sm:$0xff]
        %v210 = vld [vmem:[#allocation2 + $0x38] sm:$0xff]
        %v211 = vld [vmem:[#allocation2 + $0x40] sm:$0xff]
        %s212 = sadd.s32 %s199, 1
        %s213 = scalar_lea.vmem %s197, %s212
        %v214 = vld [vmem:[%s213] sm:$0xff]
        %v215 = vld [vmem:[%s213 + $0x8] sm:$0xff]
        %s216 = scalar_lea.vmem [#allocation2], 72
        %v217 = vld [vmem:[%s216] sm:$0xff]
        %v218 = vld [vmem:[%s216 + $0x8] sm:$0xff]
        %v219 = vld [vmem:[%s216 + $0x10] sm:$0xff]
        %v220 = vld [vmem:[%s216 + $0x18] sm:$0xff]
        %v221 = vld [vmem:[%s216 + $0x20] sm:$0xff]
        %v222 = vld [vmem:[%s216 + $0x28] sm:$0xff]
        %v223 = vld [vmem:[%s216 + $0x30] sm:$0xff]
        %v224 = vld [vmem:[%s216 + $0x38] sm:$0xff]
        %v225 = vld [vmem:[%s216 + $0x40] sm:$0xff]
        %vm226 = vcmask 588800
        %v228 = vsel %vm226, %v214, 0
        %v231 = vsel %vm226, %v215, 0
        %233 = vmatprep.subr.mxu0 0.0
        %234 = vmatpush1.msra.mxu0 %v217
        %235 = vmatprep.subr.mxu0 0.0
        %236 = vmatpush1.msra.mxu0 %v218
        %237 = vmatprep.subr.mxu0 0.0
        %238 = vmatpush1.msra.mxu0 %v219
        %239 = vmatprep.subr.mxu0 0.0
        %240 = vmatpush1.msra.mxu0 %v220
        %241 = vmatprep.subr.mxu0 0.0
        %242 = vmatpush1.msra.mxu0 %v221
        %243 = vmatprep.subr.mxu0 0.0
        %244 = vmatpush1.msra.mxu0 %v222
        %245 = vmatprep.subr.mxu0 0.0
        %246 = vmatpush1.msra.mxu0 %v223
        %247 = vmatprep.subr.mxu0 0.0
        %248 = vmatpush1.msra.mxu0 %v224
        %249 = vmatprep.subr.mxu0 0.0
        %250 = vmatpush1.msra.mxu0 %v225
        %251 = vmatprep.subr.mxu0 0.0
        %252 = vmatpush1.msra.mxu0 0.0
        %253 = vmatprep.subr.mxu0 0.0
        %254 = vmatpush1.msra.mxu0 0.0
        %255 = vmatprep.subr.mxu0 0.0
        %256 = vmatpush1.msra.mxu0 0.0
        %257 = vmatprep.subr.mxu0 0.0
        %258 = vmatpush1.msra.mxu0 0.0
        %259 = vmatprep.subr.mxu0 0.0
        %260 = vmatpush1.msra.mxu0 0.0
        %261 = vmatprep.subr.mxu0 0.0
        %262 = vmatpush1.msra.mxu0 0.0
        %263 = vmatprep.subr.mxu0 0.0
        %264 = vmatpush1.msra.mxu0 0.0
        %265 = vmatprep.subr.mxu0 0.0
        %266 = vmatpush1.msra.mxu0 0.0
        %267 = vmatprep.subr.mxu0 0.0
        %268 = vmatpush1.msra.mxu0 0.0
        %269 = vmatprep.subr.mxu0 0.0
        %270 = vmatpush1.msra.mxu0 0.0
        %271 = vmatprep.subr.mxu0 0.0
        %272 = vmatpush1.msra.mxu0 0.0
        %273 = vmatprep.subr.mxu0 0.0
        %274 = vmatpush1.msra.mxu0 0.0
        %275 = vmatprep.subr.mxu0 0.0
        %276 = vmatpush1.msra.mxu0 0.0
        %277 = vmatprep.subr.mxu0 0.0
        %278 = vmatpush1.msra.mxu0 0.0
        %279 = vmatprep.subr.mxu0 0.0
        %280 = vmatpush1.msra.mxu0 0.0
        %281 = vmatprep.subr.mxu0 0.0
        %282 = vmatpush1.msra.mxu0 0.0
        %283 = vmatprep.subr.mxu0 0.0
        %284 = vmatpush1.msra.mxu0 0.0
        %285 = vmatprep.subr.mxu0 0.0
        %286 = vmatpush1.msra.mxu0 0.0
        %287 = vmatprep.subr.mxu0 0.0
        %288 = vmatpush1.msra.mxu0 0.0
        %289 = vmatprep.subr.mxu0 0.0
        %290 = vmatpush1.msra.mxu0 0.0
        %291 = vmatprep.subr.mxu0 0.0
        %292 = vmatpush1.msra.mxu0 0.0
        %293 = vmatprep.subr.mxu0 0.0
        %294 = vmatpush1.msra.mxu0 0.0
        %295 = vmatprep.subr.mxu0 0.0
        %296 = vmatpush1.msra.mxu0 0.0
        %297 = vmatprep.mubr.f32.mxu0 0.0
        %298 = vmatmul.mubr.f32.gmra.mrb[0].mxu0 %v228
        %v299 = vpop.f32.mrb[0].mxu0
        %v300 = vadd.f32 0.0, %v299
        %v301 = vpop.f32.mrb[0].mxu0
        %302 = vmatprep.mubr.f32.mxu0 0.0
        %303 = vmatmul.mubr.f32.gmra.mrb[0].mxu0 %v231
        %v304 = vpop.f32.mrb[0].mxu0
        %v305 = vadd.f32 0.0, %v304
        %v306 = vpop.f32.mrb[0].mxu0
        %307 = vdwg.mxu0
        %v309 = vsel %vm226, %v201, 0
        %v312 = vsel %vm226, %v202, 0
        %314 = vmatprep.subr.mxu0 0.0
        %315 = vmatpush1.msra.mxu0 %v203
        %316 = vmatprep.subr.mxu0 0.0
        %317 = vmatpush1.msra.mxu0 %v204
        %318 = vmatprep.subr.mxu0 0.0
        %319 = vmatpush1.msra.mxu0 %v205
        %320 = vmatprep.subr.mxu0 0.0
        %321 = vmatpush1.msra.mxu0 %v206
        %322 = vmatprep.subr.mxu0 0.0
        %323 = vmatpush1.msra.mxu0 %v207
        %324 = vmatprep.subr.mxu0 0.0
        %325 = vmatpush1.msra.mxu0 %v208
        %326 = vmatprep.subr.mxu0 0.0
        %327 = vmatpush1.msra.mxu0 %v209
        %328 = vmatprep.subr.mxu0 0.0
        %329 = vmatpush1.msra.mxu0 %v210
        %330 = vmatprep.subr.mxu0 0.0
        %331 = vmatpush1.msra.mxu0 %v211
        %332 = vmatprep.subr.mxu0 0.0
        %333 = vmatpush1.msra.mxu0 0.0
        %334 = vmatprep.subr.mxu0 0.0
        %335 = vmatpush1.msra.mxu0 0.0
        %336 = vmatprep.subr.mxu0 0.0
        %337 = vmatpush1.msra.mxu0 0.0
        %338 = vmatprep.subr.mxu0 0.0
        %339 = vmatpush1.msra.mxu0 0.0
        %340 = vmatprep.subr.mxu0 0.0
        %341 = vmatpush1.msra.mxu0 0.0
        %342 = vmatprep.subr.mxu0 0.0
        %343 = vmatpush1.msra.mxu0 0.0
        %344 = vmatprep.subr.mxu0 0.0
        %345 = vmatpush1.msra.mxu0 0.0
        %346 = vmatprep.subr.mxu0 0.0
        %347 = vmatpush1.msra.mxu0 0.0
        %348 = vmatprep.subr.mxu0 0.0
        %349 = vmatpush1.msra.mxu0 0.0
        %350 = vmatprep.subr.mxu0 0.0
        %351 = vmatpush1.msra.mxu0 0.0
        %352 = vmatprep.subr.mxu0 0.0
        %353 = vmatpush1.msra.mxu0 0.0
        %354 = vmatprep.subr.mxu0 0.0
        %355 = vmatpush1.msra.mxu0 0.0
        %356 = vmatprep.subr.mxu0 0.0
        %357 = vmatpush1.msra.mxu0 0.0
        %358 = vmatprep.subr.mxu0 0.0
        %359 = vmatpush1.msra.mxu0 0.0
        %360 = vmatprep.subr.mxu0 0.0
        %361 = vmatpush1.msra.mxu0 0.0
        %362 = vmatprep.subr.mxu0 0.0
        %363 = vmatpush1.msra.mxu0 0.0
        %364 = vmatprep.subr.mxu0 0.0
        %365 = vmatpush1.msra.mxu0 0.0
        %366 = vmatprep.subr.mxu0 0.0
        %367 = vmatpush1.msra.mxu0 0.0
        %368 = vmatprep.subr.mxu0 0.0
        %369 = vmatpush1.msra.mxu0 0.0
        %370 = vmatprep.subr.mxu0 0.0
        %371 = vmatpush1.msra.mxu0 0.0
        %372 = vmatprep.subr.mxu0 0.0
        %373 = vmatpush1.msra.mxu0 0.0
        %374 = vmatprep.subr.mxu0 0.0
        %375 = vmatpush1.msra.mxu0 0.0
        %376 = vmatprep.subr.mxu0 0.0
        %377 = vmatpush1.msra.mxu0 0.0
        %378 = vmatprep.mubr.f32.mxu0 0.0
        %379 = vmatmul.mubr.f32.gmra.mrb[0].mxu0 %v309
        %v380 = vpop.f32.mrb[0].mxu0
        %v381 = vadd.f32 %v300, %v380
        %v382 = vpop.f32.mrb[0].mxu0
        %383 = vmatprep.mubr.f32.mxu0 0.0
        %384 = vmatmul.mubr.f32.gmra.mrb[0].mxu0 %v312
        %v385 = vpop.f32.mrb[0].mxu0
        %v386 = vadd.f32 %v305, %v385
        %v387 = vpop.f32.mrb[0].mxu0
        %388 = vdwg.mxu0
        %s389 = sadd.s32 %s199, 2
        %s390 = scalar_lea.vmem %s197, %s389
        %v391 = vld [vmem:[%s390] sm:$0xff]
        %v392 = vld [vmem:[%s390 + $0x8] sm:$0xff]
        %s393 = scalar_lea.vmem [#allocation2], 144
        %v394 = vld [vmem:[%s393] sm:$0xff]
        %v395 = vld [vmem:[%s393 + $0x8] sm:$0xff]
        %v396 = vld [vmem:[%s393 + $0x10] sm:$0xff]
        %v397 = vld [vmem:[%s393 + $0x18] sm:$0xff]
        %v398 = vld [vmem:[%s393 + $0x20] sm:$0xff]
        %v399 = vld [vmem:[%s393 + $0x28] sm:$0xff]
        %v400 = vld [vmem:[%s393 + $0x30] sm:$0xff]
        %v401 = vld [vmem:[%s393 + $0x38] sm:$0xff]
        %v402 = vld [vmem:[%s393 + $0x40] sm:$0xff]
        %v404 = vsel %vm226, %v391, 0
        %v407 = vsel %vm226, %v392, 0
        %409 = vmatprep.subr.mxu0 0.0
        %410 = vmatpush1.msra.mxu0 %v394
        %411 = vmatprep.subr.mxu0 0.0
        %412 = vmatpush1.msra.mxu0 %v395
        %413 = vmatprep.subr.mxu0 0.0
        %414 = vmatpush1.msra.mxu0 %v396
        %415 = vmatprep.subr.mxu0 0.0
        %416 = vmatpush1.msra.mxu0 %v397
        %417 = vmatprep.subr.mxu0 0.0
        %418 = vmatpush1.msra.mxu0 %v398
        %419 = vmatprep.subr.mxu0 0.0
        %420 = vmatpush1.msra.mxu0 %v399
        %421 = vmatprep.subr.mxu0 0.0
        %422 = vmatpush1.msra.mxu0 %v400
        %423 = vmatprep.subr.mxu0 0.0
        %424 = vmatpush1.msra.mxu0 %v401
        %425 = vmatprep.subr.mxu0 0.0
        %426 = vmatpush1.msra.mxu0 %v402
        %427 = vmatprep.subr.mxu0 0.0
        %428 = vmatpush1.msra.mxu0 0.0
        %429 = vmatprep.subr.mxu0 0.0
        %430 = vmatpush1.msra.mxu0 0.0
        %431 = vmatprep.subr.mxu0 0.0
        %432 = vmatpush1.msra.mxu0 0.0
        %433 = vmatprep.subr.mxu0 0.0
        %434 = vmatpush1.msra.mxu0 0.0
        %435 = vmatprep.subr.mxu0 0.0
        %436 = vmatpush1.msra.mxu0 0.0
        %437 = vmatprep.subr.mxu0 0.0
        %438 = vmatpush1.msra.mxu0 0.0
        %439 = vmatprep.subr.mxu0 0.0
        %440 = vmatpush1.msra.mxu0 0.0
        %441 = vmatprep.subr.mxu0 0.0
        %442 = vmatpush1.msra.mxu0 0.0
        %443 = vmatprep.subr.mxu0 0.0
        %444 = vmatpush1.msra.mxu0 0.0
        %445 = vmatprep.subr.mxu0 0.0
        %446 = vmatpush1.msra.mxu0 0.0
        %447 = vmatprep.subr.mxu0 0.0
        %448 = vmatpush1.msra.mxu0 0.0
        %449 = vmatprep.subr.mxu0 0.0
        %450 = vmatpush1.msra.mxu0 0.0
        %451 = vmatprep.subr.mxu0 0.0
        %452 = vmatpush1.msra.mxu0 0.0
        %453 = vmatprep.subr.mxu0 0.0
        %454 = vmatpush1.msra.mxu0 0.0
        %455 = vmatprep.subr.mxu0 0.0
        %456 = vmatpush1.msra.mxu0 0.0
        %457 = vmatprep.subr.mxu0 0.0
        %458 = vmatpush1.msra.mxu0 0.0
        %459 = vmatprep.subr.mxu0 0.0
        %460 = vmatpush1.msra.mxu0 0.0
        %461 = vmatprep.subr.mxu0 0.0
        %462 = vmatpush1.msra.mxu0 0.0
        %463 = vmatprep.subr.mxu0 0.0
        %464 = vmatpush1.msra.mxu0 0.0
        %465 = vmatprep.subr.mxu0 0.0
        %466 = vmatpush1.msra.mxu0 0.0
        %467 = vmatprep.subr.mxu0 0.0
        %468 = vmatpush1.msra.mxu0 0.0
        %469 = vmatprep.subr.mxu0 0.0
        %470 = vmatpush1.msra.mxu0 0.0
        %471 = vmatprep.subr.mxu0 0.0
        %472 = vmatpush1.msra.mxu0 0.0
        %473 = vmatprep.mubr.f32.mxu0 0.0
        %474 = vmatmul.mubr.f32.gmra.mrb[0].mxu0 %v404
        %v475 = vpop.f32.mrb[0].mxu0
        %v476 = vadd.f32 0.0, %v475
        %v477 = vpop.f32.mrb[0].mxu0
        %478 = vmatprep.mubr.f32.mxu0 0.0
        %479 = vmatmul.mubr.f32.gmra.mrb[0].mxu0 %v407
        %v480 = vpop.f32.mrb[0].mxu0
        %v481 = vadd.f32 0.0, %v480
        %v482 = vpop.f32.mrb[0].mxu0
        %483 = vdwg.mxu0
        %v484 = vadd.f32 %v381, %v476
        %v485 = vadd.f32 %v386, %v481
        %v486 = vld [vmem:[%s2] sm:$0x1]
        %v488 = vlaneseq
        %v489 = vshrl.u32 %v488, 7
        %v490 = vsub.s32 0, %v489
        %v491 = vrot.slane %v486, %v490
        %v493 = vadd.f32 %v484, %v491
        %v494 = vadd.f32 %v485, %v491
        %v495 = vmul.f32 %v493, 0.2
        %v496 = vmul.f32 %v494, 0.2
        %v497 = vmax.f32 %v493, %v495
        %v498 = vmax.f32 %v494, %v496
        %499 = vst [vmem:[%s192] sm:$0xff] %v497
        %500 = vst [vmem:[%s192 + $0x8] sm:$0xff] %v498
        %s501 = sand.u32 %s108, 1
        %s502 = scalar_lea.sflag [#allocation4], %s501
        %s503 = sand.u32 %s108, 1
        %s504 = smul.addr %s503, 16
        %s505 = scalar_lea.vmem [#allocation5], %s504
        // Predicated region
        $region37: #{tpu_custom_call.1} parent=31 // pred_check
          %p506 = pneg %p118
        $region38: #{tpu_custom_call.1} parent=31 // pred_check_branch
          %508 = sbr.rel (%p506) target = $region40
        $region39: #{tpu_custom_call.1} parent=31 // pred_region
          %s509 = smul.u32 2, %s23
          %s511 = ssub.s32 256, 256
          %512 = vsyncadd %s502, %s511
          %s513 = smul.addr %s22, 2
          %s514 = sadd.s32 %s509, %s513
          %s515 = smul.addr %s514, 128
          %s516 = scalar_lea.hbm %s3, %s515
          %s517 = sshll.u32 %s505, 4
          %s518 = int_to_ptr.vmem [resolvable:$true] %s517
          %523 = dma.vmem_to_hbm [thread:$0]  %s518, 256, %s516, %s502, 128, 128, 8
        $region40: #{tpu_custom_call.1} parent=31 // pred_fallthru
          _
      $region32: #{tpu_custom_call.1} parent=5 // pred_fallthru
        _
      %p524 = scmp.le.s32.totalorder 2, %s13
      // Predicated region
      $region41: #{tpu_custom_call.1} parent=5 // pred_check
        %p525 = pneg %p524
      $region42: #{tpu_custom_call.1} parent=5 // pred_check_branch
        %527 = sbr.rel (%p525) target = $region44
      $region43: #{tpu_custom_call.1} parent=5 // pred_region
        %s528 = ssub.s32 %s13, 2
        // Predicated region
        $region45: #{tpu_custom_call.1} parent=43 // pred_check
          %p529 = pneg %p124
        $region46: #{tpu_custom_call.1} parent=43 // pred_check_branch
          %531 = sbr.rel (%p529) target = $region48
        $region47: #{tpu_custom_call.1} parent=43 // pred_region
          %s532 = sand.u32 %s109, 1
          %s533 = scalar_lea.sflag [#allocation4], %s532
          %s534 = sand.u32 %s109, 1
          %s535 = smul.addr %s534, 16
          %s536 = scalar_lea.vmem [#allocation5], %s535
          %537 = dma.done %s533, 256
        $region48: #{tpu_custom_call.1} parent=43 // pred_fallthru
          _
      $region44: #{tpu_custom_call.1} parent=5 // pred_fallthru
        _
    $region6: #{tpu_custom_call.1} parent=1 // loop_footer
      %s17 = sadd.s32 1, %s13
    $region7: #{tpu_custom_call.1} parent=1 // loop_footer_branch
      %12 = sbr.rel target = $region3
    $region8: #{tpu_custom_call.1} parent=1 // loop_exit
      _
    %538 = vsyncpa [#allocation3], 1
    %s539 = scalar_lea.sflag [#allocation3], 1
    %540 = vsyncpa %s539, 1
    %541 = vsyncpa [#allocation4], 1
    %s542 = scalar_lea.sflag [#allocation4], 1
    %543 = vsyncpa %s542, 1

</llo_original>
